<compile_context>
chip_gen: v6e
topology: v6e:2x2x1
jax: 0.10.0
libtpu: 0.0.40
codegen_flags: <defaults>
</compile_context>

<pallas_src>
import functools

import jax
import jax.numpy as jnp
from jax.experimental import pallas as pl
from jax.experimental.pallas import tpu as pltpu


def _round_up(x: int, m: int) -> int:
    return (x + m - 1) // m * m


def _disc_block_kernel(x_ref, wt_ref, b_ref, o_ref, *, negative_slope):
    # x_ref : (tm, Cin)    activation tile (bf16), streamed over batch
    # wt_ref: (Cin, Cout)  pre-transposed weight (bf16), resident across steps
    # b_ref : (1, Cout)    bias (f32), resident
    # o_ref : (tm, Cout)   output tile, written unpadded
    y = jnp.dot(x_ref[...], wt_ref[...], preferred_element_type=jnp.float32)
    y = y + b_ref[...]
    # LeakyReLU as a single vmax; valid for 0 <= negative_slope <= 1.
    o_ref[...] = jnp.maximum(y, negative_slope * y).astype(o_ref.dtype)


def prepare_params(weight, bias, *, param_dtype=jnp.bfloat16):
    """One-time parameter preprocessing (off the per-call hot path).

    weight: (Cout, Cin) PyTorch nn.Linear layout, bias: (Cout,).
    Returns:
      wt : (Cin, Cout) weight, transposed, cast to param_dtype (bf16).
      b2 : (1, Cout)   bias kept in float32 (tiny; preserves accuracy).
    """
    out_features, in_features = weight.shape
    wt = jnp.asarray(weight).T.astype(param_dtype)            # (Cin, Cout)
    b2 = jnp.asarray(bias).reshape(1, out_features).astype(jnp.float32)
    return wt, b2


@functools.partial(jax.jit, static_argnames=("negative_slope", "block_m"))
def discriminator_block(x, wt, b2, *, negative_slope, block_m=512):
    """x: (B, Cin). wt/b2 from prepare_params. Returns (B, Cout) in x's dtype."""
    assert 0.0 <= negative_slope <= 1.0
    B, Cin = x.shape
    Cin_w, Cout = wt.shape
    assert Cin_w == Cin and b2.shape == (1, Cout)

    # Stream activations in the weight dtype (bf16) -- no-op if already bf16.
    if x.dtype != wt.dtype:
        x = x.astype(wt.dtype)
    out_dtype = x.dtype

    # --- batch tile selection -------------------------------------------
    # Sublane packing: bf16 wants multiples of 16, f32 multiples of 8
    # (a block equal to the full batch extent is always legal).
    sub = 16 if jnp.dtype(x.dtype).itemsize < 4 else 8
    if B <= sub:
        tm = B                                       # single full-extent block
    else:
        n_blocks = max(2, pl.cdiv(B, block_m))       # >=2 steps: megacore + pipelining
        tm = min(_round_up(pl.cdiv(B, n_blocks), sub), _round_up(B, sub))

    # --- VMEM budget (worst case: pipeline double-buffers everything) ----
    xb = jnp.dtype(x.dtype).itemsize
    ob = jnp.dtype(out_dtype).itemsize
    wb = jnp.dtype(wt.dtype).itemsize
    bb = jnp.dtype(b2.dtype).itemsize

    def footprint(tm_):
        stream = 2 * tm_ * (Cin * xb + Cout * ob)          # x tile + out tile
        resident = 2 * (Cin * Cout * wb + Cout * bb)       # weight + bias
        return stream + resident

    budget = 24 * 1024 * 1024   # safe on v5e/v6e (128 MiB) and v7x (64 MiB) VMEM
    while tm > sub and footprint(tm) > budget:
        tm = max(sub, _round_up(tm // 2, sub))

    grid = (pl.cdiv(B, tm),)
    vmem_limit = int(min(max(footprint(tm) + (4 << 20), 16 << 20), 60 << 20))

    kernel = functools.partial(_disc_block_kernel, negative_slope=negative_slope)

    out = pl.pallas_call(
        kernel,
        out_shape=jax.ShapeDtypeStruct((B, Cout), out_dtype),
        grid=grid,
        in_specs=[
            pl.BlockSpec((tm, Cin), lambda i: (i, 0)),      # streamed over batch
            pl.BlockSpec((Cin, Cout), lambda i: (0, 0)),    # weight stays resident
            pl.BlockSpec((1, Cout), lambda i: (0, 0)),      # bias stays resident
        ],
        out_specs=pl.BlockSpec((tm, Cout), lambda i: (i, 0)),
        compiler_params=pltpu.CompilerParams(
            dimension_semantics=("parallel",),              # megacore sharding
            vmem_limit_bytes=vmem_limit),
    )(x, wt, b2)
    return out


if __name__ == "__main__":
    key = jax.random.PRNGKey(0)
    kx, kw, kb = jax.random.split(key, 3)

    batch, in_channel, out_channel = 8, 32, 64
    negative_slope = 0.2

    # Deterministic synthetic parameters (PyTorch Linear shapes: W (out,in), b (out,))
    bound = 1.0 / (in_channel ** 0.5)
    x_f32 = jax.random.normal(kx, (batch, in_channel), dtype=jnp.float32)
    weight = jax.random.uniform(kw, (out_channel, in_channel),
                                minval=-bound, maxval=bound, dtype=jnp.float32)
    bias = jax.random.uniform(kb, (out_channel,),
                              minval=-bound, maxval=bound, dtype=jnp.float32)

    # One-time parameter prep (transpose + bf16 cast), off the hot path.
    wt, b2 = prepare_params(weight, bias)
    x = x_f32.astype(jnp.bfloat16)          # stream activations in bf16

    out = discriminator_block(x, wt, b2, negative_slope=negative_slope)
    out = jax.block_until_ready(out)

    # Pure-JAX reference with the same bf16 inputs and f32 accumulation.
    y_ref = x.astype(jnp.float32) @ wt.astype(jnp.float32) + b2
    ref = jnp.where(y_ref >= 0, y_ref, negative_slope * y_ref)

    assert out.shape == (batch, out_channel)
    assert out.dtype == jnp.bfloat16
    assert jnp.allclose(out.astype(jnp.float32), ref, atol=2e-2, rtol=2e-2), \
        "mismatch vs reference"

    print("KERNEL_OK")
</pallas_src>

<mosaic_0001>
module attributes {stable_mosaic.version = 11 : i64} {
  func.func @_disc_block_kernel(%arg0: i32, %arg1: memref<8x32xbf16, #tpu.memory_space<vmem>>, %arg2: memref<32x64xbf16, #tpu.memory_space<vmem>>, %arg3: memref<1x64xf32, #tpu.memory_space<vmem>>, %arg4: memref<8x64xbf16, #tpu.memory_space<vmem>>) attributes {dimension_semantics = [#tpu.dimension_semantics<parallel>], iteration_bounds = array<i64: 1>, scalar_prefetch = 0 : i64, scratch_operands = 0 : i64, tpu.core_type = #tpu.core_type<tc>, window_params = [{transform_indices = @transform_0, window_bounds = array<i64: 8, 32>}, {pipeline_mode = #tpu.pipeline_mode<synchronous>, transform_indices = @transform_1, window_bounds = array<i64: 32, 64>}, {pipeline_mode = #tpu.pipeline_mode<synchronous>, transform_indices = @transform_2, window_bounds = array<i64: 1, 64>}, {transform_indices = @transform_3, window_bounds = array<i64: 8, 64>}]} {
    %c0 = arith.constant 0 : index
    %c0_0 = arith.constant 0 : index
    %0 = vector.load %arg1[%c0, %c0_0] : memref<8x32xbf16, #tpu.memory_space<vmem>>, vector<8x32xbf16>
    %c0_1 = arith.constant 0 : index
    %c0_2 = arith.constant 0 : index
    %1 = vector.load %arg2[%c0_1, %c0_2] : memref<32x64xbf16, #tpu.memory_space<vmem>>, vector<32x64xbf16>
    %cst = arith.constant dense<0.000000e+00> : vector<8x64xf32>
    %2 = tpu.matmul %0, %1, %cst {dimension_numbers = #tpu.dot_dimension_numbers<[1], [0], [0], [1], [0, 0, 1, 1], [], []>} : vector<8x32xbf16>, vector<32x64xbf16>, vector<8x64xf32> -> vector<8x64xf32>
    %c0_3 = arith.constant 0 : index
    %c0_4 = arith.constant 0 : index
    %3 = vector.load %arg3[%c0_3, %c0_4] : memref<1x64xf32, #tpu.memory_space<vmem>>, vector<1x64xf32>
    %4 = vector.broadcast %3 : vector<1x64xf32> to vector<8x64xf32>
    %5 = arith.addf %2, %4 : vector<8x64xf32>
    %cst_5 = arith.constant 2.000000e-01 : f32
    %6 = vector.broadcast %cst_5 : f32 to vector<8x64xf32>
    %7 = arith.mulf %6, %5 : vector<8x64xf32>
    %8 = arith.maximumf %5, %7 : vector<8x64xf32>
    %9 = arith.truncf %8 : vector<8x64xf32> to vector<8x64xbf16>
    %c0_6 = arith.constant 0 : index
    %c0_7 = arith.constant 0 : index
    %10 = vector.load %arg4[%c0_6, %c0_7] : memref<8x64xbf16, #tpu.memory_space<vmem>>, vector<8x64xbf16>
    tpu.vector_store %arg4[%c0_6, %c0_7], %9 {strides = array<i32>} : memref<8x64xbf16, #tpu.memory_space<vmem>>, vector<8x64xbf16>,
    return
  }
  func.func @transform_0(%arg0: i32) -> (i32, i32) {
    %c0_i32 = arith.constant 0 : i32
    %c0_i32_0 = arith.constant 0 : i32
    return %arg0, %c0_i32 : i32, i32
  }
  func.func @transform_1(%arg0: i32) -> (i32, i32) {
    %c0_i32 = arith.constant 0 : i32
    %c0_i32_0 = arith.constant 0 : i32
    %c0_i32_1 = arith.constant 0 : i32
    return %c0_i32, %c0_i32_0 : i32, i32
  }
  func.func @transform_2(%arg0: i32) -> (i32, i32) {
    %c0_i32 = arith.constant 0 : i32
    %c0_i32_0 = arith.constant 0 : i32
    %c0_i32_1 = arith.constant 0 : i32
    return %c0_i32, %c0_i32_0 : i32, i32
  }
  func.func @transform_3(%arg0: i32) -> (i32, i32) {
    %c0_i32 = arith.constant 0 : i32
    %c0_i32_0 = arith.constant 0 : i32
    return %arg0, %c0_i32 : i32, i32
  }
}

</mosaic_0001>

<llo_original>
// kernel: discriminator_block.1
$region0: #{discriminator_block.1}
  #allocation0 [shape = 'u32[]', space=smem, size = 0x4, offset = 0x4, fixed_abs, tag = 'smem constant byte address 0x4 - core index']
  #allocation1 [shape = 'u32[144,128]{1,0:T(1,128)}', space=vmem, size = 0x12000, scoped, tag = 'internal scratch']
  %s0 = inlined_call_operand.hbm [shape: bf16[8,32], index: 0, kind: input, shape index: {}]
  %s1 = inlined_call_operand.hbm [shape: bf16[32,64], index: 1, kind: input, shape index: {}]
  %s2 = inlined_call_operand.vmem [shape: f32[1,64], index: 2, kind: input, shape index: {}]
  %s3 = inlined_call_operand.hbm [shape: bf16[8,64], index: 3, kind: output, shape index: {}]
  %s4 = sld [smem:[#allocation0]]
  $region30: #{discriminator_block.1} parent=0
    _
  %s6 = ssub.s32 1, %s4
  %s7 = scalar_select 0, %s6, %s4
  $region1: #{discriminator_block.1} parent=0
    #allocation2 [shape = 'u8[2048]{0}', space=vmem, size = 0x800, scoped, tag = 'input window, operand 0, single buffered']
    #allocation3 [shape = 's32[1]{0}', space=sflag, size = 0x4, scoped, tag = 'scoped memory for discriminator_block.1']
    #allocation4 [shape = 's32[1]{0}', space=sflag, size = 0x4, scoped, tag = 'scoped memory for discriminator_block.1']
    #allocation5 [shape = 'u8[8192]{0}', space=vmem, size = 0x2000, scoped, tag = 'input window, operand 1, single buffered']
    #allocation6 [shape = 's32[1]{0}', space=sflag, size = 0x4, scoped, tag = 'scoped memory for discriminator_block.1']
    #allocation7 [shape = 'u8[2048]{0}', space=vmem, size = 0x800, scoped, tag = 'output window, operand 0, single buffered']
    %8 = vsyncpa [#allocation3], 0
    %9 = vsyncpa [#allocation6], 0
    %10 = vsyncpa [#allocation4], 0
    // Predicated region
    $region2: #{discriminator_block.1} parent=1 // pred_check
      _
    $region3: #{discriminator_block.1} parent=1 // pred_check_branch
      %12 = sbr.rel (0) target = $region5
    $region4: #{discriminator_block.1} parent=1 // pred_region
      %s14 = ssub.s32 64, 64
      %15 = vsyncadd [#allocation3], %s14
      %s17 = sshll.u32 [#allocation2], 4
      %s18 = int_to_ptr.vmem [resolvable:$true] %s17
      %20 = dma.hbm_to_vmem [thread:$0]  %s0, 64, %s18, [#allocation3]
    $region5: #{discriminator_block.1} parent=1 // pred_fallthru
      _
    // Predicated region
    $region6: #{discriminator_block.1} parent=1 // pred_check
      _
    $region7: #{discriminator_block.1} parent=1 // pred_check_branch
      %22 = sbr.rel (0) target = $region9
    $region8: #{discriminator_block.1} parent=1 // pred_region
      %s24 = ssub.s32 256, 256
      %25 = vsyncadd [#allocation6], %s24
      %s26 = sshll.u32 [#allocation5], 4
      %s27 = int_to_ptr.vmem [resolvable:$true] %s26
      %32 = dma.hbm_to_vmem [thread:$0]  %s1, 256, %s27, [#allocation6], 64, 64, 4
    $region9: #{discriminator_block.1} parent=1 // pred_fallthru
      _
    // Predicated region
    $region10: #{discriminator_block.1} parent=1 // pred_check
      _
    $region11: #{discriminator_block.1} parent=1 // pred_check_branch
      %34 = sbr.rel (0) target = $region13
    $region12: #{discriminator_block.1} parent=1 // pred_region
      _
    $region13: #{discriminator_block.1} parent=1 // pred_fallthru
      _
    // Predicated region
    $region14: #{discriminator_block.1} parent=1 // pred_check
      _
    $region15: #{discriminator_block.1} parent=1 // pred_check_branch
      %36 = sbr.rel (0) target = $region17
    $region16: #{discriminator_block.1} parent=1 // pred_region
      %37 = dma.done [#allocation3], 64
    $region17: #{discriminator_block.1} parent=1 // pred_fallthru
      _
    // Predicated region
    $region18: #{discriminator_block.1} parent=1 // pred_check
      _
    $region19: #{discriminator_block.1} parent=1 // pred_check_branch
      %39 = sbr.rel (0) target = $region21
    $region20: #{discriminator_block.1} parent=1 // pred_region
      %40 = dma.done [#allocation6], 256
    $region21: #{discriminator_block.1} parent=1 // pred_fallthru
      _
    %v42 = vld [vmem:[#allocation2] sm:$0xf]
    %v43 = vld [vmem:[#allocation5] sm:$0xf]
    %v44 = vld [vmem:[#allocation5 + $0x4] sm:$0xf]
    %v45 = vld [vmem:[#allocation5 + $0x8] sm:$0xf]
    %v46 = vld [vmem:[#allocation5 + $0xc] sm:$0xf]
    %v47 = vld [vmem:[%s2] sm:$0x1]
    %v49 = vlaneseq
    %v50 = vshrl.u32 %v49, 7
    %v51 = vsub.s32 0, %v50
    %v52 = vrot.slane %v47, %v51
    %v58 = vunpack.c.l.b16 %v43
    %v59 = vunpack.c.l.b16 %v44
    %v60 = vunpack.c.l.b16 %v45
    %v61 = vunpack.c.l.b16 %v46
    %v62 = vpack.c.b16 %v59, %v58
    %v63 = vpack.c.b16 %v61, %v60
    %vm66 = vcmask 261120
    %v68 = vsel %vm66, %v42, 0
    %70 = vmatprep.subr.bf16.mxu0 0
    %71 = vmatpush1.bf16.msra.mxu0 0
    %72 = vmatprep.subr.bf16.mxu0 0
    %73 = vmatpush1.bf16.msra.mxu0 0
    %74 = vmatprep.subr.bf16.mxu0 0
    %75 = vmatpush1.bf16.msra.mxu0 0
    %76 = vmatprep.subr.bf16.mxu0 0
    %77 = vmatpush1.bf16.msra.mxu0 0
    %78 = vmatprep.subr.bf16.mxu0 0
    %79 = vmatpush1.bf16.msra.mxu0 0
    %80 = vmatprep.subr.bf16.mxu0 0
    %81 = vmatpush1.bf16.msra.mxu0 0
    %82 = vmatprep.subr.bf16.mxu0 0
    %83 = vmatpush1.bf16.msra.mxu0 %v63
    %84 = vmatprep.subr.bf16.mxu0 0
    %85 = vmatpush1.bf16.msra.mxu0 %v62
    %86 = vmatprep.subr.bf16.mxu0 0
    %87 = vmatpush2.bf16.msra.mxu0 0
    %88 = vmatprep.subr.bf16.mxu0 0
    %89 = vmatpush2.bf16.msra.mxu0 0
    %90 = vmatprep.subr.bf16.mxu0 0
    %91 = vmatpush2.bf16.msra.mxu0 0
    %92 = vmatprep.subr.bf16.mxu0 0
    %93 = vmatpush2.bf16.msra.mxu0 0
    %94 = vmatprep.subr.bf16.mxu0 0
    %95 = vmatpush2.bf16.msra.mxu0 0
    %96 = vmatprep.subr.bf16.mxu0 0
    %97 = vmatpush2.bf16.msra.mxu0 0
    %98 = vmatprep.subr.bf16.mxu0 0
    %99 = vmatpush2.bf16.msra.mxu0 0
    %100 = vmatprep.subr.bf16.mxu0 0
    %101 = vmatpush2.bf16.msra.mxu0 0
    %102 = vmatprep.mubr.bf16.mxu0 0
    %103 = vmatmul.mubr.bf16.gmra.mxu0 %v68
    %v104 = vpop.f32.mrf.mxu0
    %v105 = vadd.f32 %v52, %v104
    %v106 = vpop.f32.mrf.mxu0
    %v107 = vpop.f32.mrf.mxu0
    %v108 = vpop.f32.mrf.mxu0
    %109 = vdwg.mxu0
    %v110 = vmul.f32 %v105, 0.2
    %v111 = vmax.f32 %v105, %v110
    %v112 = vpack.c.bf16 %v111, %v111
    %vm113 = vcmask 519168
    %114 = vst.msk [vmem:[#allocation7] sm:$0xf] %vm113, %v112
    // Predicated region
    $region22: #{discriminator_block.1} parent=1 // pred_check
      _
    $region23: #{discriminator_block.1} parent=1 // pred_check_branch
      %116 = sbr.rel (0) target = $region25
    $region24: #{discriminator_block.1} parent=1 // pred_region
      %s118 = ssub.s32 64, 64
      %119 = vsyncadd [#allocation4], %s118
      %s121 = sshll.u32 [#allocation7], 4
      %s122 = int_to_ptr.vmem [resolvable:$true] %s121
      %124 = dma.vmem_to_hbm [thread:$0]  %s122, 64, %s3, [#allocation4]
    $region25: #{discriminator_block.1} parent=1 // pred_fallthru
      _
    // Predicated region
    $region26: #{discriminator_block.1} parent=1 // pred_check
      _
    $region27: #{discriminator_block.1} parent=1 // pred_check_branch
      %126 = sbr.rel (0) target = $region29
    $region28: #{discriminator_block.1} parent=1 // pred_region
      %127 = dma.done [#allocation4], 64
    $region29: #{discriminator_block.1} parent=1 // pred_fallthru
      _
    %128 = vsyncpa [#allocation3], 1
    %129 = vsyncpa [#allocation6], 1
    %130 = vsyncpa [#allocation4], 1

</llo_original>
